<compile_context>
chip_gen: v7x
topology: tpu7x:2x2x1
jax: 0.10.0
libtpu: 0.0.40
codegen_flags: <defaults>
</compile_context>

<pallas_src>
from functools import partial

import jax
import jax.numpy as jnp
import numpy as np
from jax.experimental import pallas as pl
from jax.experimental.pallas import tpu as pltpu


def _round_up(x, m):
    return ((x + m - 1) // m) * m


# ----------------------------- Pallas kernel ------------------------------ #
def _decoder_kernel(h_ref, w_ref, out_ref, *, dim_in, two_h, l2_row, dim_x):
    """Fused mean+variance decoder MLP (one batch tile per grid step).

    h_ref:   (TB, dim_in)            rows of [mu | z]
    w_ref:   (n_rows, lanes)         packed weights:
               rows [0:dim_in]          cols [0:two_h]     -> [W1m | W1v]
               row  [dim_in]            cols [0:two_h]     -> [b1m | b1v]
               rows [l2_row:l2_row+2H]  cols [0:2*dim_x]   -> blockdiag(W2m, W2v)
               row  [l2_row+2H]         cols [0:2*dim_x]   -> [b2m | b2v]
    out_ref: (TB, 2*dim_x)           cols: [x_mean | x_var]
    """
    h = h_ref[...]

    # ---- layer 1: one K=dim_in MXU pass for both heads, bias row folded in.
    w1 = w_ref[:dim_in, :two_h]
    b1 = w_ref[dim_in:dim_in + 1, :two_h]
    h1 = jnp.maximum(
        jnp.dot(h, w1, preferred_element_type=jnp.float32) + b1, 0.0)

    # ---- layer 2: block-diagonal -> [pre_mean | pre_var] in one MXU pass.
    w2 = w_ref[l2_row:l2_row + two_h, :2 * dim_x]
    b2 = w_ref[l2_row + two_h:l2_row + two_h + 1, :2 * dim_x]
    pre = jnp.dot(h1, w2, preferred_element_type=jnp.float32) + b2

    # ---- single full-width store; softplus on everything (EUP slot is idle),
    # mean half selected back with a lane mask.  +1e-6 keeps x_var > 0.
    col = jax.lax.broadcasted_iota(jnp.int32, pre.shape, dimension=1)
    out_ref[...] = jnp.where(col >= dim_x, jax.nn.softplus(pre) + 1e-6, pre)


# ----------------------------- wrapper ------------------------------------ #
def var_decoder_no_prior_forward(mu, z, packed, shape_x, *, batch_tile=512):
    """Pallas implementation of VarDecoderNoPrior.forward.

    mu: (n_batch, dim_mu) float32
    z:  (n_batch, dim_z)  float32
    packed: dict from pack_params (single fused weight buffer + layout info)
    returns (x_mean, x_var), each (n_batch, *shape_x), x_var > 0 everywhere.
    """
    n_batch = mu.shape[0]
    dim_mu, dim_z = mu.shape[1], z.shape[1]
    dim_in = dim_mu + dim_z
    dim_x = int(np.prod(shape_x))

    w_aug = packed["w_aug"]
    two_h = packed["two_h"]
    l2_row = packed["l2_row"]

    # One lane-contiguous activation input (same summation order as reference).
    h_in = jnp.concatenate(
        [mu.astype(jnp.float32), z.astype(jnp.float32)], axis=-1)

    # Batch tiling: pad the batch to a multiple of the tile so the block shape
    # is legal ((8,128)-rule: sublane dim multiple of 8 or full array dim).
    tb = min(batch_tile, _round_up(n_batch, 8))
    tb = _round_up(tb, 8)
    n_pad = _round_up(n_batch, tb)
    if n_pad != n_batch:
        h_in = jnp.pad(h_in, ((0, n_pad - n_batch), (0, 0)))
    grid = (n_pad // tb,)

    flops = 2 * n_pad * (dim_in * two_h + two_h * 2 * dim_x)
    transcendentals = 2 * n_pad * 2 * dim_x          # softplus ~ exp + log1p
    bytes_accessed = 4 * (n_pad * dim_in + int(np.prod(w_aug.shape))
                          + n_pad * 2 * dim_x)
    cost = pl.CostEstimate(flops=flops, transcendentals=transcendentals,
                           bytes_accessed=bytes_accessed)

    kernel = partial(_decoder_kernel, dim_in=dim_in, two_h=two_h,
                     l2_row=l2_row, dim_x=dim_x)

    out = pl.pallas_call(
        kernel,
        out_shape=jax.ShapeDtypeStruct((n_pad, 2 * dim_x), jnp.float32),
        grid_spec=pltpu.PrefetchScalarGridSpec(
            num_scalar_prefetch=0,
            grid=grid,
            in_specs=[
                pl.BlockSpec((tb, dim_in), lambda i: (i, 0)),     # batch-tiled
                pl.BlockSpec(w_aug.shape, lambda i: (0, 0)),      # VMEM-resident
            ],
            out_specs=pl.BlockSpec((tb, 2 * dim_x), lambda i: (i, 0)),
        ),
        compiler_params=pltpu.CompilerParams(
            dimension_semantics=("parallel",)),
        cost_estimate=cost,
    )(h_in, w_aug)

    out = out[:n_batch]
    x_mean = out[:, :dim_x].reshape((n_batch,) + tuple(shape_x))
    x_var = out[:, dim_x:].reshape((n_batch,) + tuple(shape_x))
    return x_mean, x_var


# ----------------------------- parameter packing --------------------------- #
def pack_params(params, dim_mu, dim_z, hidden, dim_x):
    """Pack both sub-nets (weights + biases) into ONE lane-dense VMEM buffer."""
    dim_in = dim_mu + dim_z
    two_h = 2 * hidden
    l2_row = _round_up(dim_in + 1, 8)                 # 8-row-aligned layer-2 block
    n_rows = _round_up(l2_row + two_h + 1, 8)
    lanes = _round_up(max(two_h, 2 * dim_x), 128)

    w_aug = jnp.zeros((n_rows, lanes), jnp.float32)
    # layer 1: cols = [mean | var], plus a bias row
    w1 = jnp.concatenate([params["w1m"], params["w1v"]], axis=1)   # (dim_in, 2H)
    b1 = jnp.concatenate([params["b1m"], params["b1v"]], axis=1)   # (1, 2H)
    w_aug = w_aug.at[:dim_in, :two_h].set(w1)
    w_aug = w_aug.at[dim_in, :two_h].set(b1[0])
    # layer 2: block-diagonal (kept while 2H <= 128), plus a bias row
    w_aug = w_aug.at[l2_row:l2_row + hidden, :dim_x].set(params["w2m"])
    w_aug = w_aug.at[l2_row + hidden:l2_row + two_h, dim_x:2 * dim_x].set(params["w2v"])
    b2 = jnp.concatenate([params["b2m"], params["b2v"]], axis=1)   # (1, 2*dim_x)
    w_aug = w_aug.at[l2_row + two_h, :2 * dim_x].set(b2[0])

    return {"w_aug": w_aug, "two_h": two_h, "l2_row": l2_row}


# ----------------------------- reference (pure JAX) ------------------------ #
def _reference_forward(mu, z, params, shape_x):
    h = jnp.concatenate([mu, z], axis=-1).astype(jnp.float32)
    a1 = jnp.maximum(h @ params["w1m"] + params["b1m"], 0.0)
    mean = a1 @ params["w2m"] + params["b2m"]
    v1 = jnp.maximum(h @ params["w1v"] + params["b1v"], 0.0)
    var = jax.nn.softplus(v1 @ params["w2v"] + params["b2v"]) + 1e-6
    n_batch = mu.shape[0]
    return (mean.reshape((n_batch,) + tuple(shape_x)),
            var.reshape((n_batch,) + tuple(shape_x)))


# ----------------------------- parameter init ------------------------------ #
def init_params(key, dim_mu, dim_z, hidden, dim_x):
    dim_in = dim_mu + dim_z
    keys = jax.random.split(key, 8)

    def dense(k, fan_in, fan_out):
        scale = 1.0 / np.sqrt(fan_in)
        return jax.random.uniform(k, (fan_in, fan_out), jnp.float32, -scale, scale)

    return {
        "w1m": dense(keys[0], dim_in, hidden),
        "b1m": jax.random.uniform(keys[1], (1, hidden), jnp.float32, -0.1, 0.1),
        "w2m": dense(keys[2], hidden, dim_x),
        "b2m": jax.random.uniform(keys[3], (1, dim_x), jnp.float32, -0.1, 0.1),
        "w1v": dense(keys[4], dim_in, hidden),
        "b1v": jax.random.uniform(keys[5], (1, hidden), jnp.float32, -0.1, 0.1),
        "w2v": dense(keys[6], hidden, dim_x),
        "b2v": jax.random.uniform(keys[7], (1, dim_x), jnp.float32, -0.1, 0.1),
    }


# ----------------------------- main ---------------------------------------- #
if __name__ == "__main__":
    # Config (small, consistent with VarAutoencoderConfig)
    n_batch = 2
    dim_mu = 8
    dim_z = 8
    hidden = 32
    shape_x = (16, 16)          # dim_x = 256
    dim_x = int(np.prod(shape_x))

    key = jax.random.PRNGKey(0)
    k_mu, k_z, k_p = jax.random.split(key, 3)
    mu = jax.random.normal(k_mu, (n_batch, dim_mu), jnp.float32)
    z = jax.random.normal(k_z, (n_batch, dim_z), jnp.float32)
    params = init_params(k_p, dim_mu, dim_z, hidden, dim_x)

    # Parameter-finiteness check from forward() (host-side; torch asserts on
    # parameters have no in-kernel equivalent).
    for name, p in params.items():
        assert np.all(np.isfinite(np.asarray(p))), f"Decoder: Parameter {name} is not finite."

    packed = pack_params(params, dim_mu, dim_z, hidden, dim_x)

    # ---- primary check at the module's nominal tiny batch ----
    x_mean, x_var = var_decoder_no_prior_forward(mu, z, packed, shape_x)
    jax.block_until_ready((x_mean, x_var))

    ref_mean, ref_var = _reference_forward(mu, z, params, shape_x)
    assert x_mean.shape == (n_batch,) + shape_x
    assert x_var.shape == (n_batch,) + shape_x
    np.testing.assert_allclose(np.asarray(x_mean), np.asarray(ref_mean),
                               rtol=1e-5, atol=1e-5)
    np.testing.assert_allclose(np.asarray(x_var), np.asarray(ref_var),
                               rtol=1e-5, atol=1e-5)
    assert np.all(np.asarray(x_var) > 0), "Decoder: Variance must be positive."

    # ---- secondary check: exercise the multi-step batch grid + padding ----
    nb2 = 20
    k_mu2, k_z2 = jax.random.split(jax.random.PRNGKey(1), 2)
    mu2 = jax.random.normal(k_mu2, (nb2, dim_mu), jnp.float32)
    z2 = jax.random.normal(k_z2, (nb2, dim_z), jnp.float32)
    xm2, xv2 = var_decoder_no_prior_forward(mu2, z2, packed, shape_x, batch_tile=8)
    jax.block_until_ready((xm2, xv2))
    rm2, rv2 = _reference_forward(mu2, z2, params, shape_x)
    np.testing.assert_allclose(np.asarray(xm2), np.asarray(rm2), rtol=1e-5, atol=1e-5)
    np.testing.assert_allclose(np.asarray(xv2), np.asarray(rv2), rtol=1e-5, atol=1e-5)
    assert np.all(np.asarray(xv2) > 0), "Decoder: Variance must be positive."

    print("KERNEL_OK")
</pallas_src>

<mosaic_0001>
module attributes {stable_mosaic.version = 11 : i64} {
  func.func @_decoder_kernel(%arg0: i32, %arg1: memref<8x16xf32, #tpu.memory_space<vmem>>, %arg2: memref<96x512xf32, #tpu.memory_space<vmem>>, %arg3: memref<8x512xf32, #tpu.memory_space<vmem>>) attributes {dimension_semantics = [#tpu.dimension_semantics<parallel>], iteration_bounds = array<i64: 1>, scalar_prefetch = 0 : i64, scratch_operands = 0 : i64, tpu.core_type = #tpu.core_type<tc>, window_params = [{transform_indices = @transform_0, window_bounds = array<i64: 8, 16>}, {pipeline_mode = #tpu.pipeline_mode<synchronous>, transform_indices = @transform_1, window_bounds = array<i64: 96, 512>}, {transform_indices = @transform_2, window_bounds = array<i64: 8, 512>}]} {
    %c0 = arith.constant 0 : index
    %c0_0 = arith.constant 0 : index
    %0 = vector.load %arg1[%c0, %c0_0] : memref<8x16xf32, #tpu.memory_space<vmem>>, vector<8x16xf32>
    %c0_1 = arith.constant 0 : index
    %c0_2 = arith.constant 0 : index
    %1 = vector.load %arg2[%c0_1, %c0_2] : memref<96x512xf32, #tpu.memory_space<vmem>>, vector<16x64xf32>
    %c16 = arith.constant 16 : index
    %c0_3 = arith.constant 0 : index
    %2 = vector.load %arg2[%c16, %c0_3] : memref<96x512xf32, #tpu.memory_space<vmem>>, vector<1x64xf32>
    %cst = arith.constant dense<0.000000e+00> : vector<8x64xf32>
    %3 = tpu.matmul %0, %1, %cst {dimension_numbers = #tpu.dot_dimension_numbers<[1], [0], [0], [1], [0, 0, 1, 1], [], []>} : vector<8x16xf32>, vector<16x64xf32>, vector<8x64xf32> -> vector<8x64xf32>
    %4 = vector.broadcast %2 : vector<1x64xf32> to vector<8x64xf32>
    %5 = arith.addf %3, %4 : vector<8x64xf32>
    %cst_4 = arith.constant 0.000000e+00 : f32
    %6 = vector.broadcast %cst_4 : f32 to vector<8x64xf32>
    %7 = arith.maximumf %5, %6 : vector<8x64xf32>
    %c24 = arith.constant 24 : index
    %c0_5 = arith.constant 0 : index
    %8 = vector.load %arg2[%c24, %c0_5] : memref<96x512xf32, #tpu.memory_space<vmem>>, vector<64x512xf32>
    %c88 = arith.constant 88 : index
    %c0_6 = arith.constant 0 : index
    %9 = vector.load %arg2[%c88, %c0_6] : memref<96x512xf32, #tpu.memory_space<vmem>>, vector<1x512xf32>
    %cst_7 = arith.constant dense<0.000000e+00> : vector<8x512xf32>
    %10 = tpu.matmul %7, %8, %cst_7 {dimension_numbers = #tpu.dot_dimension_numbers<[1], [0], [0], [1], [0, 0, 1, 1], [], []>} : vector<8x64xf32>, vector<64x512xf32>, vector<8x512xf32> -> vector<8x512xf32>
    %11 = vector.broadcast %9 : vector<1x512xf32> to vector<8x512xf32>
    %12 = arith.addf %10, %11 : vector<8x512xf32>
    %13 = tpu.iota {dimensions = array<i32: 1>} : vector<8x512xi32>
    %c256_i32 = arith.constant 256 : i32
    %14 = vector.broadcast %c256_i32 : i32 to vector<8x512xi32>
    %15 = arith.cmpi sge, %13, %14 : vector<8x512xi32>
    %cst_8 = arith.constant 0.000000e+00 : f32
    %16 = vector.broadcast %cst_8 : f32 to vector<8x512xf32>
    %17 = arith.maximumf %12, %16 : vector<8x512xf32>
    %18 = vector.broadcast %cst_8 : f32 to vector<8x512xf32>
    %19 = arith.subf %12, %18 : vector<8x512xf32>
    %20 = arith.cmpf one, %19, %19 : vector<8x512xf32>
    %21 = vector.broadcast %cst_8 : f32 to vector<8x512xf32>
    %22 = arith.addf %12, %21 : vector<8x512xf32>
    %23 = math.absf %19 : vector<8x512xf32>
    %cst_9 = arith.constant 0.000000e+00 : f32
    %24 = vector.broadcast %cst_9 : f32 to vector<8x512xf32>
    %25 = arith.subf %24, %23 : vector<8x512xf32>
    %26 = math.exp %25 : vector<8x512xf32>
    %27 = math.log1p %26 : vector<8x512xf32>
    %28 = arith.addf %17, %27 : vector<8x512xf32>
    %29 = arith.select %20, %22, %28 : vector<8x512xi1>, vector<8x512xf32>
    %cst_10 = arith.constant 9.99999997E-7 : f32
    %30 = vector.broadcast %cst_10 : f32 to vector<8x512xf32>
    %31 = arith.addf %29, %30 : vector<8x512xf32>
    %32 = arith.select %15, %31, %12 : vector<8x512xi1>, vector<8x512xf32>
    %c0_11 = arith.constant 0 : index
    %c0_12 = arith.constant 0 : index
    %33 = vector.load %arg3[%c0_11, %c0_12] : memref<8x512xf32, #tpu.memory_space<vmem>>, vector<8x512xf32>
    tpu.vector_store %arg3[%c0_11, %c0_12], %32 {strides = array<i32>} : memref<8x512xf32, #tpu.memory_space<vmem>>, vector<8x512xf32>,
    return
  }
  func.func @transform_0(%arg0: i32) -> (i32, i32) {
    %c0_i32 = arith.constant 0 : i32
    %c0_i32_0 = arith.constant 0 : i32
    return %arg0, %c0_i32 : i32, i32
  }
  func.func @transform_1(%arg0: i32) -> (i32, i32) {
    %c0_i32 = arith.constant 0 : i32
    %c0_i32_0 = arith.constant 0 : i32
    %c0_i32_1 = arith.constant 0 : i32
    return %c0_i32, %c0_i32_0 : i32, i32
  }
  func.func @transform_2(%arg0: i32) -> (i32, i32) {
    %c0_i32 = arith.constant 0 : i32
    %c0_i32_0 = arith.constant 0 : i32
    return %arg0, %c0_i32 : i32, i32
  }
}

</mosaic_0001>

<llo_original>
// kernel: tpu_custom_call.1
$region0: #{tpu_custom_call.1}
  #allocation0 [shape = 'u32[]', space=smem, size = 0x4, offset = 0x4, fixed_abs, tag = 'smem constant byte address 0x4 - core index']
  #allocation1 [shape = 'u32[144,128]{1,0:T(1,128)}', space=vmem, size = 0x12000, scoped, tag = 'internal scratch']
  %s0 = inlined_call_operand.hbm [shape: f32[8,16], index: 0, kind: input, shape index: {}]
  %s1 = inlined_call_operand.hbm [shape: f32[96,512], index: 1, kind: input, shape index: {}]
  %s2 = inlined_call_operand.hbm [shape: f32[8,512], index: 2, kind: output, shape index: {}]
  %s3 = sld [smem:[#allocation0]]
  $region26: #{tpu_custom_call.1} parent=0
    _
  %s5 = ssub.s32 1, %s3
  %s6 = scalar_select 0, %s5, %s3
  $region1: #{tpu_custom_call.1} parent=0
    #allocation2 [shape = 'u8[4096]{0}', space=vmem, size = 0x1000, scoped, tag = 'input window, operand 0, single buffered']
    #allocation3 [shape = 's32[1]{0}', space=sflag, size = 0x4, scoped, tag = 'scoped memory for tpu_custom_call.1']
    #allocation4 [shape = 's32[1]{0}', space=sflag, size = 0x4, scoped, tag = 'scoped memory for tpu_custom_call.1']
    #allocation5 [shape = 'u8[196608]{0}', space=vmem, size = 0x30000, scoped, tag = 'input window, operand 1, single buffered']
    #allocation6 [shape = 's32[1]{0}', space=sflag, size = 0x4, scoped, tag = 'scoped memory for tpu_custom_call.1']
    #allocation7 [shape = 'u8[16384]{0}', space=vmem, size = 0x4000, scoped, tag = 'output window, operand 0, single buffered']
    %7 = vsyncpa [#allocation3], 0
    %8 = vsyncpa [#allocation6], 0
    %9 = vsyncpa [#allocation4], 0
    // Predicated region
    $region2: #{tpu_custom_call.1} parent=1 // pred_check
      _
    $region3: #{tpu_custom_call.1} parent=1 // pred_check_branch
      %11 = sbr.rel (0) target = $region5
    $region4: #{tpu_custom_call.1} parent=1 // pred_region
      %s13 = ssub.s32 128, 128
      %14 = vsyncadd [#allocation3], %s13
      %s16 = sshll.u32 [#allocation2], 4
      %s17 = int_to_ptr.vmem [resolvable:$true] %s16
      %19 = dma.hbm_to_vmem [thread:$0]  %s0, 128, %s17, [#allocation3]
    $region5: #{tpu_custom_call.1} parent=1 // pred_fallthru
      _
    // Predicated region
    $region6: #{tpu_custom_call.1} parent=1 // pred_check
      _
    $region7: #{tpu_custom_call.1} parent=1 // pred_check_branch
      %21 = sbr.rel (0) target = $region9
    $region8: #{tpu_custom_call.1} parent=1 // pred_region
      %s23 = ssub.s32 6144, 6144
      %24 = vsyncadd [#allocation6], %s23
      %s25 = sshll.u32 [#allocation5], 4
      %s26 = int_to_ptr.vmem [resolvable:$true] %s25
      %31 = dma.hbm_to_vmem [thread:$0]  %s1, 6144, %s26, [#allocation6], 512, 512, 32
    $region9: #{tpu_custom_call.1} parent=1 // pred_fallthru
      _
    // Predicated region
    $region10: #{tpu_custom_call.1} parent=1 // pred_check
      _
    $region11: #{tpu_custom_call.1} parent=1 // pred_check_branch
      %33 = sbr.rel (0) target = $region13
    $region12: #{tpu_custom_call.1} parent=1 // pred_region
      %34 = dma.done [#allocation3], 128
    $region13: #{tpu_custom_call.1} parent=1 // pred_fallthru
      _
    // Predicated region
    $region14: #{tpu_custom_call.1} parent=1 // pred_check
      _
    $region15: #{tpu_custom_call.1} parent=1 // pred_check_branch
      %36 = sbr.rel (0) target = $region17
    $region16: #{tpu_custom_call.1} parent=1 // pred_region
      %37 = dma.done [#allocation6], 6144
    $region17: #{tpu_custom_call.1} parent=1 // pred_fallthru
      _
    %v38 = vld [vmem:[#allocation2] sm:$0xff]
    %v39 = vld [vmem:[#allocation5] sm:$0xff]
    %v40 = vld [vmem:[#allocation5 + $0x20] sm:$0xff]
    %v41 = vld [vmem:[#allocation5 + $0x40] ss:$0 sm:$0xff]
    %vm42 = vcmask 130048
    %v44 = vsel %vm42, %v38, 0
    %46 = vmatprep.subr.mxu0 0.0
    %47 = vmatpush1.msra.mxu0 %v39
    %48 = vmatprep.subr.mxu0 0.0
    %49 = vmatpush1.msra.mxu0 %v40
    %50 = vmatprep.subr.mxu0 0.0
    %51 = vmatpush1.msra.mxu0 0.0
    %52 = vmatprep.subr.mxu0 0.0
    %53 = vmatpush1.msra.mxu0 0.0
    %54 = vmatprep.subr.mxu0 0.0
    %55 = vmatpush1.msra.mxu0 0.0
    %56 = vmatprep.subr.mxu0 0.0
    %57 = vmatpush1.msra.mxu0 0.0
    %58 = vmatprep.subr.mxu0 0.0
    %59 = vmatpush1.msra.mxu0 0.0
    %60 = vmatprep.subr.mxu0 0.0
    %61 = vmatpush1.msra.mxu0 0.0
    %62 = vmatprep.subr.mxu0 0.0
    %63 = vmatpush1.msra.mxu0 0.0
    %64 = vmatprep.subr.mxu0 0.0
    %65 = vmatpush1.msra.mxu0 0.0
    %66 = vmatprep.subr.mxu0 0.0
    %67 = vmatpush1.msra.mxu0 0.0
    %68 = vmatprep.subr.mxu0 0.0
    %69 = vmatpush1.msra.mxu0 0.0
    %70 = vmatprep.subr.mxu0 0.0
    %71 = vmatpush1.msra.mxu0 0.0
    %72 = vmatprep.subr.mxu0 0.0
    %73 = vmatpush1.msra.mxu0 0.0
    %74 = vmatprep.subr.mxu0 0.0
    %75 = vmatpush1.msra.mxu0 0.0
    %76 = vmatprep.subr.mxu0 0.0
    %77 = vmatpush1.msra.mxu0 0.0
    %78 = vmatprep.subr.mxu0 0.0
    %79 = vmatpush1.msra.mxu0 0.0
    %80 = vmatprep.subr.mxu0 0.0
    %81 = vmatpush1.msra.mxu0 0.0
    %82 = vmatprep.subr.mxu0 0.0
    %83 = vmatpush1.msra.mxu0 0.0
    %84 = vmatprep.subr.mxu0 0.0
    %85 = vmatpush1.msra.mxu0 0.0
    %86 = vmatprep.subr.mxu0 0.0
    %87 = vmatpush1.msra.mxu0 0.0
    %88 = vmatprep.subr.mxu0 0.0
    %89 = vmatpush1.msra.mxu0 0.0
    %90 = vmatprep.subr.mxu0 0.0
    %91 = vmatpush1.msra.mxu0 0.0
    %92 = vmatprep.subr.mxu0 0.0
    %93 = vmatpush1.msra.mxu0 0.0
    %94 = vmatprep.subr.mxu0 0.0
    %95 = vmatpush1.msra.mxu0 0.0
    %96 = vmatprep.subr.mxu0 0.0
    %97 = vmatpush1.msra.mxu0 0.0
    %98 = vmatprep.subr.mxu0 0.0
    %99 = vmatpush1.msra.mxu0 0.0
    %100 = vmatprep.subr.mxu0 0.0
    %101 = vmatpush1.msra.mxu0 0.0
    %102 = vmatprep.subr.mxu0 0.0
    %103 = vmatpush1.msra.mxu0 0.0
    %104 = vmatprep.subr.mxu0 0.0
    %105 = vmatpush1.msra.mxu0 0.0
    %106 = vmatprep.subr.mxu0 0.0
    %107 = vmatpush1.msra.mxu0 0.0
    %108 = vmatprep.subr.mxu0 0.0
    %109 = vmatpush1.msra.mxu0 0.0
    %110 = vmatprep.mubr.f32.mxu0 0.0
    %111 = vmatmul.mubr.f32.gmra.mrb[0].mxu0 %v44
    %v112 = vpop.f32.mrb[0].mxu0
    %v113 = vadd.f32 %v41, %v112
    %v114 = vpop.f32.mrb[0].mxu0
    %115 = vdwg.mxu0
    %v116 = vmax.f32 %v113, 0.0
    %v117 = vld [vmem:[#allocation5 + $0x60] sm:$0xff]
    %v118 = vld [vmem:[#allocation5 + $0x68] sm:$0xff]
    %v119 = vld [vmem:[#allocation5 + $0x70] sm:$0xff]
    %v120 = vld [vmem:[#allocation5 + $0x78] sm:$0xff]
    %v121 = vld [vmem:[#allocation5 + $0x80] sm:$0xff]
    %v122 = vld [vmem:[#allocation5 + $0x88] sm:$0xff]
    %v123 = vld [vmem:[#allocation5 + $0x90] sm:$0xff]
    %v124 = vld [vmem:[#allocation5 + $0x98] sm:$0xff]
    %v125 = vld [vmem:[#allocation5 + $0xa0] sm:$0xff]
    %v126 = vld [vmem:[#allocation5 + $0xa8] sm:$0xff]
    %v127 = vld [vmem:[#allocation5 + $0xb0] sm:$0xff]
    %v128 = vld [vmem:[#allocation5 + $0xb8] sm:$0xff]
    %v129 = vld [vmem:[#allocation5 + $0xc0] sm:$0xff]
    %v130 = vld [vmem:[#allocation5 + $0xc8] sm:$0xff]
    %v131 = vld [vmem:[#allocation5 + $0xd0] sm:$0xff]
    %v132 = vld [vmem:[#allocation5 + $0xd8] sm:$0xff]
    %v133 = vld [vmem:[#allocation5 + $0xe0] sm:$0xff]
    %v134 = vld [vmem:[#allocation5 + $0xe8] sm:$0xff]
    %v135 = vld [vmem:[#allocation5 + $0xf0] sm:$0xff]
    %v136 = vld [vmem:[#allocation5 + $0xf8] sm:$0xff]
    %v137 = vld [vmem:[#allocation5 + $0x100] sm:$0xff]
    %v138 = vld [vmem:[#allocation5 + $0x108] sm:$0xff]
    %v139 = vld [vmem:[#allocation5 + $0x110] sm:$0xff]
    %v140 = vld [vmem:[#allocation5 + $0x118] sm:$0xff]
    %v141 = vld [vmem:[#allocation5 + $0x120] sm:$0xff]
    %v142 = vld [vmem:[#allocation5 + $0x128] sm:$0xff]
    %v143 = vld [vmem:[#allocation5 + $0x130] sm:$0xff]
    %v144 = vld [vmem:[#allocation5 + $0x138] sm:$0xff]
    %v145 = vld [vmem:[#allocation5 + $0x140] sm:$0xff]
    %v146 = vld [vmem:[#allocation5 + $0x148] sm:$0xff]
    %v147 = vld [vmem:[#allocation5 + $0x150] sm:$0xff]
    %v148 = vld [vmem:[#allocation5 + $0x158] sm:$0xff]
    %s149 = scalar_lea.vmem [#allocation5], 352
    %v150 = vld [vmem:[%s149] ss:$8 sm:$0xf]
    %v152 = vlaneseq
    %v153 = vshrl.u32 %v152, 7
    %v154 = vsub.s32 0, %v153
    %v155 = vrot.slane %v150, %v154
    %v156 = vlaneseq
    %v157 = vshrl.u32 %v156, 7
    %v158 = vsub.s32 1, %v157
    %v159 = vrot.slane %v150, %v158
    %v160 = vlaneseq
    %v161 = vshrl.u32 %v160, 7
    %v162 = vsub.s32 2, %v161
    %v163 = vrot.slane %v150, %v162
    %v164 = vlaneseq
    %v165 = vshrl.u32 %v164, 7
    %v166 = vsub.s32 3, %v165
    %v167 = vrot.slane %v150, %v166
    %vm172 = vcmask 523264
    %v174 = vsel %vm172, %v116, 0
    %176 = vmatprep.subr.mxu0 %v118
    %177 = vmatpush1.msra.mxu0 %v117
    %178 = vmatprep.subr.mxu0 %v122
    %179 = vmatpush1.msra.mxu0 %v121
    %180 = vmatprep.subr.mxu0 %v126
    %181 = vmatpush1.msra.mxu0 %v125
    %182 = vmatprep.subr.mxu0 %v130
    %183 = vmatpush1.msra.mxu0 %v129
    %184 = vmatprep.subr.mxu0 %v134
    %185 = vmatpush1.msra.mxu0 %v133
    %186 = vmatprep.subr.mxu0 %v138
    %187 = vmatpush1.msra.mxu0 %v137
    %188 = vmatprep.subr.mxu0 %v142
    %189 = vmatpush1.msra.mxu0 %v141
    %190 = vmatprep.subr.mxu0 %v146
    %191 = vmatpush1.msra.mxu0 %v145
    %192 = vmatprep.subr.mxu0 0.0
    %193 = vmatpush1.msra.mxu0 0.0
    %194 = vmatprep.subr.mxu0 0.0
    %195 = vmatpush1.msra.mxu0 0.0
    %196 = vmatprep.subr.mxu0 0.0
    %197 = vmatpush1.msra.mxu0 0.0
    %198 = vmatprep.subr.mxu0 0.0
    %199 = vmatpush1.msra.mxu0 0.0
    %200 = vmatprep.subr.mxu0 0.0
    %201 = vmatpush1.msra.mxu0 0.0
    %202 = vmatprep.subr.mxu0 0.0
    %203 = vmatpush1.msra.mxu0 0.0
    %204 = vmatprep.subr.mxu0 0.0
    %205 = vmatpush1.msra.mxu0 0.0
    %206 = vmatprep.subr.mxu0 0.0
    %207 = vmatpush1.msra.mxu0 0.0
    %208 = vmatprep.subr.mxu0 0.0
    %209 = vmatpush1.msra.mxu0 0.0
    %210 = vmatprep.subr.mxu0 0.0
    %211 = vmatpush1.msra.mxu0 0.0
    %212 = vmatprep.subr.mxu0 0.0
    %213 = vmatpush1.msra.mxu0 0.0
    %214 = vmatprep.subr.mxu0 0.0
    %215 = vmatpush1.msra.mxu0 0.0
    %216 = vmatprep.subr.mxu0 0.0
    %217 = vmatpush1.msra.mxu0 0.0
    %218 = vmatprep.subr.mxu0 0.0
    %219 = vmatpush1.msra.mxu0 0.0
    %220 = vmatprep.subr.mxu0 0.0
    %221 = vmatpush1.msra.mxu0 0.0
    %222 = vmatprep.subr.mxu0 0.0
    %223 = vmatpush1.msra.mxu0 0.0
    %224 = vmatprep.subr.mxu0 0.0
    %225 = vmatpush1.msra.mxu0 0.0
    %226 = vmatprep.subr.mxu0 0.0
    %227 = vmatpush1.msra.mxu0 0.0
    %228 = vmatprep.subr.mxu0 0.0
    %229 = vmatpush1.msra.mxu0 0.0
    %230 = vmatprep.subr.mxu0 0.0
    %231 = vmatpush1.msra.mxu0 0.0
    %232 = vmatprep.subr.mxu0 0.0
    %233 = vmatpush1.msra.mxu0 0.0
    %234 = vmatprep.subr.mxu0 0.0
    %235 = vmatpush1.msra.mxu0 0.0
    %236 = vmatprep.subr.mxu0 0.0
    %237 = vmatpush1.msra.mxu0 0.0
    %238 = vmatprep.subr.mxu0 0.0
    %239 = vmatpush1.msra.mxu0 0.0
    %240 = vmatprep.mubr.f32.mxu0 0.0
    %241 = vmatmul.mubr.f32.gmra.mrb[0].mxu0 %v174
    %v242 = vpop.f32.mrb[0].mxu0
    %v243 = vadd.f32 %v155, %v242
    %v244 = vpop.f32.mrb[0].mxu0
    %v245 = vadd.f32 %v159, %v244
    %246 = vdwg.mxu0
    %247 = vmatprep.subr.mxu0 %v120
    %248 = vmatpush1.msra.mxu0 %v119
    %249 = vmatprep.subr.mxu0 %v124
    %250 = vmatpush1.msra.mxu0 %v123
    %251 = vmatprep.subr.mxu0 %v128
    %252 = vmatpush1.msra.mxu0 %v127
    %253 = vmatprep.subr.mxu0 %v132
    %254 = vmatpush1.msra.mxu0 %v131
    %255 = vmatprep.subr.mxu0 %v136
    %256 = vmatpush1.msra.mxu0 %v135
    %257 = vmatprep.subr.mxu0 %v140
    %258 = vmatpush1.msra.mxu0 %v139
    %259 = vmatprep.subr.mxu0 %v144
    %260 = vmatpush1.msra.mxu0 %v143
    %261 = vmatprep.subr.mxu0 %v148
    %262 = vmatpush1.msra.mxu0 %v147
    %263 = vmatprep.subr.mxu0 0.0
    %264 = vmatpush1.msra.mxu0 0.0
    %265 = vmatprep.subr.mxu0 0.0
    %266 = vmatpush1.msra.mxu0 0.0
    %267 = vmatprep.subr.mxu0 0.0
    %268 = vmatpush1.msra.mxu0 0.0
    %269 = vmatprep.subr.mxu0 0.0
    %270 = vmatpush1.msra.mxu0 0.0
    %271 = vmatprep.subr.mxu0 0.0
    %272 = vmatpush1.msra.mxu0 0.0
    %273 = vmatprep.subr.mxu0 0.0
    %274 = vmatpush1.msra.mxu0 0.0
    %275 = vmatprep.subr.mxu0 0.0
    %276 = vmatpush1.msra.mxu0 0.0
    %277 = vmatprep.subr.mxu0 0.0
    %278 = vmatpush1.msra.mxu0 0.0
    %279 = vmatprep.subr.mxu0 0.0
    %280 = vmatpush1.msra.mxu0 0.0
    %281 = vmatprep.subr.mxu0 0.0
    %282 = vmatpush1.msra.mxu0 0.0
    %283 = vmatprep.subr.mxu0 0.0
    %284 = vmatpush1.msra.mxu0 0.0
    %285 = vmatprep.subr.mxu0 0.0
    %286 = vmatpush1.msra.mxu0 0.0
    %287 = vmatprep.subr.mxu0 0.0
    %288 = vmatpush1.msra.mxu0 0.0
    %289 = vmatprep.subr.mxu0 0.0
    %290 = vmatpush1.msra.mxu0 0.0
    %291 = vmatprep.subr.mxu0 0.0
    %292 = vmatpush1.msra.mxu0 0.0
    %293 = vmatprep.subr.mxu0 0.0
    %294 = vmatpush1.msra.mxu0 0.0
    %295 = vmatprep.subr.mxu0 0.0
    %296 = vmatpush1.msra.mxu0 0.0
    %297 = vmatprep.subr.mxu0 0.0
    %298 = vmatpush1.msra.mxu0 0.0
    %299 = vmatprep.subr.mxu0 0.0
    %300 = vmatpush1.msra.mxu0 0.0
    %301 = vmatprep.subr.mxu0 0.0
    %302 = vmatpush1.msra.mxu0 0.0
    %303 = vmatprep.subr.mxu0 0.0
    %304 = vmatpush1.msra.mxu0 0.0
    %305 = vmatprep.subr.mxu0 0.0
    %306 = vmatpush1.msra.mxu0 0.0
    %307 = vmatprep.subr.mxu0 0.0
    %308 = vmatpush1.msra.mxu0 0.0
    %309 = vmatprep.subr.mxu0 0.0
    %310 = vmatpush1.msra.mxu0 0.0
    %311 = vmatprep.mubr.f32.mxu0 0.0
    %312 = vmatmul.mubr.f32.gmra.mrb[0].mxu0 %v174
    %v313 = vpop.f32.mrb[0].mxu0
    %v314 = vadd.f32 %v163, %v313
    %v315 = vpop.f32.mrb[0].mxu0
    %v316 = vadd.f32 %v167, %v315
    %317 = vdwg.mxu0
    %v318 = vlaneseq
    %v319 = vand.u32 %v318, 127
    %v320 = vadd.s32 %v319, 128
    %v321 = vadd.s32 %v319, 256
    %v322 = vadd.s32 %v319, 384
    %vm323 = vcmp.ge.s32.totalorder %v319, 256
    %vm324 = vcmp.ge.s32.totalorder %v320, 256
    %vm325 = vcmp.ge.s32.totalorder %v321, 256
    %vm326 = vcmp.ge.s32.totalorder %v322, 256
    %v327 = vmax.f32 %v243, 0.0
    %v328 = vmax.f32 %v245, 0.0
    %v329 = vmax.f32 %v314, 0.0
    %v330 = vmax.f32 %v316, 0.0
    %vm331 = vcmp.ne.f32.partialorder %v243, %v243
    %vm332 = vcmp.ne.f32.partialorder %v245, %v245
    %vm333 = vcmp.ne.f32.partialorder %v314, %v314
    %vm334 = vcmp.ne.f32.partialorder %v316, %v316
    %v335 = vadd.f32 %v243, 0.0
    %v336 = vadd.f32 %v245, 0.0
    %v337 = vadd.f32 %v314, 0.0
    %v338 = vadd.f32 %v316, 0.0
    %v339 = vand.u32 2147483647, %v243
    %v340 = vand.u32 2147483647, %v245
    %v341 = vand.u32 2147483647, %v314
    %v342 = vand.u32 2147483647, %v316
    %v343 = vsub.f32 0.0, %v339
    %v344 = vsub.f32 0.0, %v340
    %v345 = vsub.f32 0.0, %v341
    %v346 = vsub.f32 0.0, %v342
    %v347 = vmul.f32 %v343, 1.442695
    %v348 = vpow.pop %v347
    %v349 = vmul.f32 %v344, 1.442695
    %v350 = vpow.pop %v349
    %v351 = vmul.f32 %v345, 1.442695
    %v352 = vpow.pop %v351
    %v353 = vmul.f32 %v346, 1.442695
    %v354 = vpow.pop %v353
    %v355 = vadd.f32 %v348, 1.0
    %v356 = vlog2.pop %v355
    %v357 = vmul.f32 %v356, 0.6931472
    %v358 = vmul.f32 -0.5, %v348
    %v359 = vadd.f32 %v358, 1.0
    %v360 = vmul.f32 %v359, %v348
    %v361 = vand.u32 2147483647, %v348
    %vm362 = vcmp.lt.f32.partialorder %v361, 0.0004427343
    %v363 = vsel %vm362, %v360, %v357
    %v364 = vadd.f32 %v350, 1.0
    %v365 = vlog2.pop %v364
    %v366 = vmul.f32 %v365, 0.6931472
    %v367 = vmul.f32 -0.5, %v350
    %v368 = vadd.f32 %v367, 1.0
    %v369 = vmul.f32 %v368, %v350
    %v370 = vand.u32 2147483647, %v350
    %vm371 = vcmp.lt.f32.partialorder %v370, 0.0004427343
    %v372 = vsel %vm371, %v369, %v366
    %v373 = vadd.f32 %v352, 1.0
    %v374 = vlog2.pop %v373
    %v375 = vmul.f32 %v374, 0.6931472
    %v376 = vmul.f32 -0.5, %v352
    %v377 = vadd.f32 %v376, 1.0
    %v378 = vmul.f32 %v377, %v352
    %v379 = vand.u32 2147483647, %v352
    %vm380 = vcmp.lt.f32.partialorder %v379, 0.0004427343
    %v381 = vsel %vm380, %v378, %v375
    %v382 = vadd.f32 %v354, 1.0
    %v383 = vlog2.pop %v382
    %v384 = vmul.f32 %v383, 0.6931472
    %v385 = vmul.f32 -0.5, %v354
    %v386 = vadd.f32 %v385, 1.0
    %v387 = vmul.f32 %v386, %v354
    %v388 = vand.u32 2147483647, %v354
    %vm389 = vcmp.lt.f32.partialorder %v388, 0.0004427343
    %v390 = vsel %vm389, %v387, %v384
    %v391 = vadd.f32 %v327, %v363
    %v392 = vadd.f32 %v328, %v372
    %v393 = vadd.f32 %v329, %v381
    %v394 = vadd.f32 %v330, %v390
    %v395 = vsel %vm331, %v335, %v391
    %v396 = vsel %vm332, %v336, %v392
    %v397 = vsel %vm333, %v337, %v393
    %v398 = vsel %vm334, %v338, %v394
    %v399 = vadd.f32 %v395, 1e-06
    %v400 = vadd.f32 %v396, 1e-06
    %v401 = vadd.f32 %v397, 1e-06
    %v402 = vadd.f32 %v398, 1e-06
    %v403 = vsel %vm323, %v399, %v243
    %v404 = vsel %vm324, %v400, %v245
    %v405 = vsel %vm325, %v401, %v314
    %v406 = vsel %vm326, %v402, %v316
    %407 = vst [vmem:[#allocation7] sm:$0xff] %v403
    %408 = vst [vmem:[#allocation7 + $0x8] sm:$0xff] %v404
    %409 = vst [vmem:[#allocation7 + $0x10] sm:$0xff] %v405
    %410 = vst [vmem:[#allocation7 + $0x18] sm:$0xff] %v406
    // Predicated region
    $region18: #{tpu_custom_call.1} parent=1 // pred_check
      _
    $region19: #{tpu_custom_call.1} parent=1 // pred_check_branch
      %412 = sbr.rel (0) target = $region21
    $region20: #{tpu_custom_call.1} parent=1 // pred_region
      %s414 = ssub.s32 512, 512
      %415 = vsyncadd [#allocation4], %s414
      %s417 = sshll.u32 [#allocation7], 4
      %s418 = int_to_ptr.vmem [resolvable:$true] %s417
      %420 = dma.vmem_to_hbm [thread:$0]  %s418, 512, %s2, [#allocation4]
    $region21: #{tpu_custom_call.1} parent=1 // pred_fallthru
      _
    // Predicated region
    $region22: #{tpu_custom_call.1} parent=1 // pred_check
      _
    $region23: #{tpu_custom_call.1} parent=1 // pred_check_branch
      %422 = sbr.rel (0) target = $region25
    $region24: #{tpu_custom_call.1} parent=1 // pred_region
      %423 = dma.done [#allocation4], 512
    $region25: #{tpu_custom_call.1} parent=1 // pred_fallthru
      _
    %424 = vsyncpa [#allocation3], 1
    %425 = vsyncpa [#allocation6], 1
    %426 = vsyncpa [#allocation4], 1

</llo_original>
